<compile_context>
chip_gen: v6e
topology: v6e:2x2x1
jax: 0.10.0
libtpu: 0.0.40
codegen_flags: <defaults>
</compile_context>

<pallas_src>
import math

import jax
import jax.numpy as jnp
from jax.experimental import pallas as pl
from jax.experimental.pallas import tpu as pltpu

_LANE_WIDTHS = (1024, 512, 256, 128)     # lane-dense candidates (multiples of 128)
_TARGET_BLOCK_BYTES = 4 * 1024 * 1024    # ~4 MiB per block (BW plateau; VMEM-safe)

# Coefficients of 0.5*sin(pi*t) = t * sum_k C[k] * (t^2)^k, degree-11 Taylor.
# C[k] = 0.5 * (-1)^k * pi^(2k+1) / (2k+1)!   (truncation error <= 2.9e-8 on |t|<=0.5)
_COEFFS = tuple(
    0.5 * (-1.0) ** k * math.pi ** (2 * k + 1) / math.factorial(2 * k + 1)
    for k in range(6)
)


def _cosine_neg_kernel(x_ref, o_ref):
    # Upcast once; Mosaic fuses the cast vreg-by-vreg (no f32 block temp).
    x = x_ref[...].astype(jnp.float32)

    # y_poly = 0.5 + 0.5*sin(pi*(x-0.5))  ==  (1 - cos(pi*x)) / 2 on [0, 1].
    t = x - jnp.float32(0.5)
    w = t * t
    p = jnp.float32(_COEFFS[5])
    p = jnp.float32(_COEFFS[4]) + w * p
    p = jnp.float32(_COEFFS[3]) + w * p
    p = jnp.float32(_COEFFS[2]) + w * p
    p = jnp.float32(_COEFFS[1]) + w * p
    p = jnp.float32(_COEFFS[0]) + w * p
    y = jnp.float32(0.5) + t * p

    # Exact branch semantics: x<=0 -> 0, x>=1 -> 1, NaN falls through to poly
    # (both comparisons False) and stays NaN — matches the torch where-chain.
    y = jnp.where(x <= jnp.float32(0.0), jnp.float32(0.0),
                  jnp.where(x >= jnp.float32(1.0), jnp.float32(1.0), y))
    o_ref[...] = y.astype(o_ref.dtype)


def cosine_neg_activation(x: jax.Array) -> jax.Array:
    """Elementwise CosineNegActivation via a Pallas TPU kernel."""
    orig_shape = x.shape
    orig_dtype = x.dtype
    n = x.size
    if n == 0:
        return x

    # Widest lane-dense width dividing numel -> no pad / no post-slice copies.
    W = None
    for cand in _LANE_WIDTHS:
        if n % cand == 0:
            W = cand
            break

    flat = x.reshape(-1)                 # contiguous reshape: free
    pad = 0
    if W is None:                        # truly ragged element count: pad fallback
        W = _LANE_WIDTHS[0]
        pad = (-n) % W
        flat = jnp.pad(flat, (0, pad))
    rows = (n + pad) // W
    slab = flat.reshape(rows, W)

    itemsize = jnp.dtype(orig_dtype).itemsize
    # Rows per block targeting ~4 MiB; multiple of 16 covers f32 (8-sublane)
    # and bf16 (16-sublane) packing.
    target_rows = max(16, (_TARGET_BLOCK_BYTES // (W * itemsize)) // 16 * 16)
    # Guarantee >= 2 roughly balanced grid steps when possible so both v7x
    # TensorCores are fed (single-TC chips are unaffected).
    half_rows = (((rows + 1) // 2) + 15) // 16 * 16
    row_tile = min(target_rows, half_rows, rows)
    if row_tile >= rows:
        row_tile = rows                  # full-dim block: always a legal shape

    grid = (pl.cdiv(rows, row_tile),)    # ragged last block handled by Pallas

    # Advisory cost hint for XLA's scheduler (pure-VALU poly, no transcendentals).
    n_total = rows * W
    cost = pl.CostEstimate(
        flops=18 * n_total,
        transcendentals=0,
        bytes_accessed=2 * n_total * itemsize,
    )

    out = pl.pallas_call(
        _cosine_neg_kernel,
        out_shape=jax.ShapeDtypeStruct((rows, W), orig_dtype),
        grid=grid,
        in_specs=[pl.BlockSpec((row_tile, W), lambda i: (i, 0))],
        out_specs=pl.BlockSpec((row_tile, W), lambda i: (i, 0)),
        compiler_params=pltpu.CompilerParams(
            dimension_semantics=("parallel",),
            vmem_limit_bytes=32 * 1024 * 1024,
        ),
        cost_estimate=cost,
    )(slab)

    flat_out = out.reshape(-1)
    if pad:
        flat_out = flat_out[:n]
    return flat_out.reshape(orig_shape)


def _reference(x):
    xf = x.astype(jnp.float32)
    return jnp.where(
        xf < 0.0,
        0.0,
        jnp.where(xf > 1.0, 1.0, (-jnp.cos(jnp.float32(math.pi) * xf) + 1.0) / 2.0),
    )


if __name__ == "__main__":
    key = jax.random.PRNGKey(0)
    k1, k2, k3, k4 = jax.random.split(key, 4)

    # Small NCHW input consistent with a conv-style activation input.
    x = jax.random.normal(k1, (2, 4, 16, 16), dtype=jnp.float32) * 1.5
    y = cosine_neg_activation(x)
    jax.block_until_ready(y)
    assert y.shape == x.shape and y.dtype == x.dtype
    assert jnp.allclose(y.astype(jnp.float32), _reference(x), atol=2e-6, rtol=0)

    # Ragged element count (exercises the pad fallback path).
    x2 = jax.random.normal(k2, (3, 5, 7, 11), dtype=jnp.float32) * 2.0
    y2 = cosine_neg_activation(x2)
    jax.block_until_ready(y2)
    assert y2.shape == x2.shape and y2.dtype == x2.dtype
    assert jnp.allclose(y2.astype(jnp.float32), _reference(x2), atol=2e-6, rtol=0)

    # Larger input -> multi-block parallel grid (two balanced 2 MiB blocks).
    x3 = jax.random.normal(k3, (8, 128, 1024), dtype=jnp.float32)
    y3 = cosine_neg_activation(x3)
    jax.block_until_ready(y3)
    assert jnp.allclose(y3.astype(jnp.float32), _reference(x3), atol=2e-6, rtol=0)

    # Edge / special values: exact endpoints, out-of-range, NaN propagation.
    xe = jnp.array([-2.0, -0.0, 0.0, 0.25, 0.5, 0.75, 1.0, 3.0, jnp.nan] * 16,
                   dtype=jnp.float32)
    ye = cosine_neg_activation(xe)
    jax.block_until_ready(ye)
    re = _reference(xe)
    finite = jnp.isfinite(re)
    assert jnp.allclose(jnp.where(finite, ye, 0.0), jnp.where(finite, re, 0.0),
                        atol=2e-6, rtol=0)
    assert bool(jnp.all(jnp.isnan(ye) == jnp.isnan(re)))

    # bf16 input path (compute in f32, cast at the store).
    xb = (jax.random.normal(k4, (4, 64, 256), dtype=jnp.float32) * 1.5).astype(jnp.bfloat16)
    yb = cosine_neg_activation(xb)
    jax.block_until_ready(yb)
    assert yb.dtype == jnp.bfloat16
    assert jnp.allclose(yb.astype(jnp.float32), _reference(xb), atol=8e-3, rtol=0)

    print("KERNEL_OK")
</pallas_src>

<mosaic_0001>
module attributes {stable_mosaic.version = 11 : i64} {
  func.func @_cosine_neg_kernel(%arg0: i32, %arg1: memref<2x1024xf32, #tpu.memory_space<vmem>>, %arg2: memref<2x1024xf32, #tpu.memory_space<vmem>>) attributes {dimension_semantics = [#tpu.dimension_semantics<parallel>], iteration_bounds = array<i64: 1>, scalar_prefetch = 0 : i64, scratch_operands = 0 : i64, tpu.core_type = #tpu.core_type<tc>, window_params = [{transform_indices = @transform_0, window_bounds = array<i64: 2, 1024>}, {transform_indices = @transform_1, window_bounds = array<i64: 2, 1024>}]} {
    %c0 = arith.constant 0 : index
    %c0_0 = arith.constant 0 : index
    %0 = vector.load %arg1[%c0, %c0_0] : memref<2x1024xf32, #tpu.memory_space<vmem>>, vector<2x1024xf32>
    %cst = arith.constant 5.000000e-01 : f32
    %1 = vector.broadcast %cst : f32 to vector<2x1024xf32>
    %2 = arith.subf %0, %1 : vector<2x1024xf32>
    %3 = arith.mulf %2, %2 : vector<2x1024xf32>
    %cst_1 = arith.constant -0.00368521549 : f32
    %4 = vector.broadcast %cst_1 : f32 to vector<2x1024xf32>
    %5 = arith.mulf %3, %4 : vector<2x1024xf32>
    %cst_2 = arith.constant 0.0410729423 : f32
    %6 = vector.broadcast %cst_2 : f32 to vector<2x1024xf32>
    %7 = arith.addf %6, %5 : vector<2x1024xf32>
    %8 = arith.mulf %3, %7 : vector<2x1024xf32>
    %cst_3 = arith.constant -0.299632251 : f32
    %9 = vector.broadcast %cst_3 : f32 to vector<2x1024xf32>
    %10 = arith.addf %9, %8 : vector<2x1024xf32>
    %11 = arith.mulf %3, %10 : vector<2x1024xf32>
    %cst_4 = arith.constant 1.27508199 : f32
    %12 = vector.broadcast %cst_4 : f32 to vector<2x1024xf32>
    %13 = arith.addf %12, %11 : vector<2x1024xf32>
    %14 = arith.mulf %3, %13 : vector<2x1024xf32>
    %cst_5 = arith.constant -2.58385634 : f32
    %15 = vector.broadcast %cst_5 : f32 to vector<2x1024xf32>
    %16 = arith.addf %15, %14 : vector<2x1024xf32>
    %17 = arith.mulf %3, %16 : vector<2x1024xf32>
    %cst_6 = arith.constant 1.57079637 : f32
    %18 = vector.broadcast %cst_6 : f32 to vector<2x1024xf32>
    %19 = arith.addf %18, %17 : vector<2x1024xf32>
    %20 = arith.mulf %2, %19 : vector<2x1024xf32>
    %cst_7 = arith.constant 5.000000e-01 : f32
    %21 = vector.broadcast %cst_7 : f32 to vector<2x1024xf32>
    %22 = arith.addf %21, %20 : vector<2x1024xf32>
    %cst_8 = arith.constant 0.000000e+00 : f32
    %23 = vector.broadcast %cst_8 : f32 to vector<2x1024xf32>
    %24 = arith.cmpf ole, %0, %23 : vector<2x1024xf32>
    %cst_9 = arith.constant 1.000000e+00 : f32
    %25 = vector.broadcast %cst_9 : f32 to vector<2x1024xf32>
    %26 = arith.cmpf oge, %0, %25 : vector<2x1024xf32>
    %cst_10 = arith.constant 1.000000e+00 : f32
    %27 = vector.broadcast %cst_10 : f32 to vector<2x1024xf32>
    %28 = arith.select %26, %27, %22 : vector<2x1024xi1>, vector<2x1024xf32>
    %cst_11 = arith.constant 0.000000e+00 : f32
    %29 = vector.broadcast %cst_11 : f32 to vector<2x1024xf32>
    %30 = arith.select %24, %29, %28 : vector<2x1024xi1>, vector<2x1024xf32>
    %c0_12 = arith.constant 0 : index
    %c0_13 = arith.constant 0 : index
    %31 = vector.load %arg2[%c0_12, %c0_13] : memref<2x1024xf32, #tpu.memory_space<vmem>>, vector<2x1024xf32>
    tpu.vector_store %arg2[%c0_12, %c0_13], %30 {strides = array<i32>} : memref<2x1024xf32, #tpu.memory_space<vmem>>, vector<2x1024xf32>,
    return
  }
  func.func @transform_0(%arg0: i32) -> (i32, i32) {
    %c0_i32 = arith.constant 0 : i32
    %c0_i32_0 = arith.constant 0 : i32
    return %arg0, %c0_i32 : i32, i32
  }
  func.func @transform_1(%arg0: i32) -> (i32, i32) {
    %c0_i32 = arith.constant 0 : i32
    %c0_i32_0 = arith.constant 0 : i32
    return %arg0, %c0_i32 : i32, i32
  }
}

</mosaic_0001>

<llo_original>
// kernel: tpu_custom_call.1
$region0: #{tpu_custom_call.1}
  #allocation0 [shape = 'u32[]', space=smem, size = 0x4, offset = 0x4, fixed_abs, tag = 'smem constant byte address 0x4 - core index']
  #allocation1 [shape = 'u32[144,128]{1,0:T(1,128)}', space=vmem, size = 0x12000, scoped, tag = 'internal scratch']
  %s0 = inlined_call_operand.hbm [shape: f32[2,1024], index: 0, kind: input, shape index: {}]
  %s1 = inlined_call_operand.hbm [shape: f32[2,1024], index: 1, kind: output, shape index: {}]
  %s2 = sld [smem:[#allocation0]]
  $region18: #{tpu_custom_call.1} parent=0
    _
  %s4 = ssub.s32 1, %s2
  %s5 = scalar_select 0, %s4, %s2
  $region1: #{tpu_custom_call.1} parent=0
    #allocation2 [shape = 'u8[8192]{0}', space=vmem, size = 0x2000, scoped, tag = 'input window, operand 0, single buffered']
    #allocation3 [shape = 's32[1]{0}', space=sflag, size = 0x4, scoped, tag = 'scoped memory for tpu_custom_call.1']
    #allocation4 [shape = 's32[1]{0}', space=sflag, size = 0x4, scoped, tag = 'scoped memory for tpu_custom_call.1']
    #allocation5 [shape = 'u8[8192]{0}', space=vmem, size = 0x2000, scoped, tag = 'output window, operand 0, single buffered']
    %6 = vsyncpa [#allocation3], 0
    %7 = vsyncpa [#allocation4], 0
    // Predicated region
    $region2: #{tpu_custom_call.1} parent=1 // pred_check
      _
    $region3: #{tpu_custom_call.1} parent=1 // pred_check_branch
      %9 = sbr.rel (0) target = $region5
    $region4: #{tpu_custom_call.1} parent=1 // pred_region
      %s11 = ssub.s32 256, 256
      %12 = vsyncadd [#allocation3], %s11
      %s14 = sshll.u32 [#allocation2], 4
      %s15 = int_to_ptr.vmem [resolvable:$true] %s14
      %17 = dma.hbm_to_vmem [thread:$0]  %s0, 256, %s15, [#allocation3]
    $region5: #{tpu_custom_call.1} parent=1 // pred_fallthru
      _
    // Predicated region
    $region6: #{tpu_custom_call.1} parent=1 // pred_check
      _
    $region7: #{tpu_custom_call.1} parent=1 // pred_check_branch
      %19 = sbr.rel (0) target = $region9
    $region8: #{tpu_custom_call.1} parent=1 // pred_region
      %20 = dma.done [#allocation3], 256
    $region9: #{tpu_custom_call.1} parent=1 // pred_fallthru
      _
    %v21 = vld [vmem:[#allocation2] sm:$0xff]
    %v22 = vld [vmem:[#allocation2 + $0x8] sm:$0xff]
    %v23 = vsub.f32 %v21, 0.5
    %v24 = vsub.f32 %v22, 0.5
    %v25 = vmul.f32 %v23, %v23
    %v26 = vmul.f32 %v24, %v24
    %v27 = vmul.f32 %v25, -0.0036852155
    %v28 = vmul.f32 %v26, -0.0036852155
    %v29 = vadd.f32 %v27, 0.041072942
    %v30 = vadd.f32 %v28, 0.041072942
    %v31 = vmul.f32 %v25, %v29
    %v32 = vmul.f32 %v26, %v30
    %v33 = vadd.f32 %v31, -0.29963225
    %v34 = vadd.f32 %v32, -0.29963225
    %v35 = vmul.f32 %v25, %v33
    %v36 = vmul.f32 %v26, %v34
    %v37 = vadd.f32 %v35, 1.275082
    %v38 = vadd.f32 %v36, 1.275082
    %v39 = vmul.f32 %v25, %v37
    %v40 = vmul.f32 %v26, %v38
    %v41 = vadd.f32 %v39, -2.5838563
    %v42 = vadd.f32 %v40, -2.5838563
    %v43 = vmul.f32 %v25, %v41
    %v44 = vmul.f32 %v26, %v42
    %v45 = vadd.f32 %v43, 1.5707964
    %v46 = vadd.f32 %v44, 1.5707964
    %v47 = vmul.f32 %v23, %v45
    %v48 = vmul.f32 %v24, %v46
    %v49 = vadd.f32 %v47, 0.5
    %v50 = vadd.f32 %v48, 0.5
    %vm51 = vcmp.le.f32.partialorder %v21, 0.0
    %vm52 = vcmp.le.f32.partialorder %v22, 0.0
    %vm53 = vcmp.ge.f32.partialorder %v21, 1.0
    %vm54 = vcmp.ge.f32.partialorder %v22, 1.0
    %v55 = vsel %vm53, 1.0, %v49
    %v56 = vsel %vm54, 1.0, %v50
    %v57 = vsel %vm51, 0.0, %v55
    %v58 = vsel %vm52, 0.0, %v56
    %59 = vst [vmem:[#allocation5] sm:$0xff] %v57
    %60 = vst [vmem:[#allocation5 + $0x8] sm:$0xff] %v58
    // Predicated region
    $region10: #{tpu_custom_call.1} parent=1 // pred_check
      _
    $region11: #{tpu_custom_call.1} parent=1 // pred_check_branch
      %62 = sbr.rel (0) target = $region13
    $region12: #{tpu_custom_call.1} parent=1 // pred_region
      %s64 = ssub.s32 256, 256
      %65 = vsyncadd [#allocation4], %s64
      %s67 = sshll.u32 [#allocation5], 4
      %s68 = int_to_ptr.vmem [resolvable:$true] %s67
      %70 = dma.vmem_to_hbm [thread:$0]  %s68, 256, %s1, [#allocation4]
    $region13: #{tpu_custom_call.1} parent=1 // pred_fallthru
      _
    // Predicated region
    $region14: #{tpu_custom_call.1} parent=1 // pred_check
      _
    $region15: #{tpu_custom_call.1} parent=1 // pred_check_branch
      %72 = sbr.rel (0) target = $region17
    $region16: #{tpu_custom_call.1} parent=1 // pred_region
      %73 = dma.done [#allocation4], 256
    $region17: #{tpu_custom_call.1} parent=1 // pred_fallthru
      _
    %74 = vsyncpa [#allocation3], 1
    %75 = vsyncpa [#allocation4], 1

</llo_original>
